<compile_context>
chip_gen: v5e
topology: v5e:2x2
jax: 0.10.0
libtpu: 0.0.40
codegen_flags: <defaults>
</compile_context>

<pallas_src>
import functools

import jax
import jax.numpy as jnp
from jax.experimental import pallas as pl
from jax.experimental.pallas import tpu as pltpu

IN_DIM = 376
HID = 128
MEAN_DIM = 17
STD_DIM = 1
HEAD_DIM = MEAN_DIM + STD_DIM    # 18: columns 0:17 = mean, column 17 = log_std


def _round_up(n, m):
    return (n + m - 1) // m * m


def rl_model_kernel(
    x_ref,
    w1_ref, b1_ref,
    w2_ref, b2_ref,
    w3_ref, b3_ref,
    wh_ref, bh_ref,
    mean_ref, scale_ref,
):
    # x arrives in its source dtype (f32 or bf16); cast to bf16 on the VPU so
    # the MXU runs bf16 with f32 accumulation.  Bias adds / ReLU stay f32.
    x = x_ref[...]
    if x.dtype != jnp.bfloat16:
        x = x.astype(jnp.bfloat16)

    h = jnp.dot(x, w1_ref[...], preferred_element_type=jnp.float32) + b1_ref[...]
    h = jnp.maximum(h, 0.0)

    h = jnp.dot(h.astype(jnp.bfloat16), w2_ref[...],
                preferred_element_type=jnp.float32) + b2_ref[...]
    h = jnp.maximum(h, 0.0)

    h = jnp.dot(h.astype(jnp.bfloat16), w3_ref[...],
                preferred_element_type=jnp.float32) + b3_ref[...]
    h = jnp.maximum(h, 0.0)

    # Fused heads: one (128, 18) matmul; split in-register, exp on the EUP.
    out = jnp.dot(h.astype(jnp.bfloat16), wh_ref[...],
                  preferred_element_type=jnp.float32) + bh_ref[...]
    mean_ref[...] = out[:, :MEAN_DIM].astype(mean_ref.dtype)
    scale_ref[...] = jnp.exp(out[:, MEAN_DIM:HEAD_DIM]).astype(scale_ref.dtype)


def prepare_params(params):
    """One-time param prep: fuse the mean/std heads, cast weights to bf16."""
    (w1, b1, w2, b2, w3, b3, wm, bm, ws, bs) = params
    bf = jnp.bfloat16
    wh = jnp.concatenate([wm, ws], axis=1)     # (128, 18)
    bh = jnp.concatenate([bm, bs], axis=1)     # (1, 18)
    # TODO(synk): for small-batch inference on v5e/v6e, int8 weight quant would
    # halve the dominant per-call weight DMA; v7x MXU has no int path, so the
    # portable choice here stays bf16.
    return (w1.astype(bf), b1,
            w2.astype(bf), b2,
            w3.astype(bf), b3,
            wh.astype(bf), bh)


def _choose_tile_b(B, tile_b=None):
    """Batch tile: block-legal for any B, targets ~8 even grid steps."""
    if tile_b is not None:
        return max(8, min(_round_up(int(tile_b), 8), _round_up(B, 8)))
    if B <= 16:
        return B                              # single block == full dim -> legal
    tb = _round_up(-(-B // 8), 16)            # aim for ~8 grid steps
    tb = max(128, min(tb, 2048))              # amortize ~0.35us/step; VMEM-safe cap
    tb = min(tb, _round_up(-(-B // 2), 16))   # >=2 steps so both v7x TCs get work
    return tb


@functools.partial(jax.jit, static_argnames=("tile_b",))
def rl_model_forward(x, prepared, *, tile_b=None):
    """x: (B, 376) float32 (or bfloat16).

    Returns (mean, scale): mean (B, 17) f32, scale (B, 1) f32 — the parameters
    of Normal(mean, scale); scale broadcasts against mean exactly as the
    PyTorch Normal(mean, exp(std)) does.
    """
    (w1, b1, w2, b2, w3, b3, wh, bh) = prepared
    B = x.shape[0]

    tb = _choose_tile_b(B, tile_b)
    grid = (pl.cdiv(B, tb),)                  # boundary block is masked by Pallas

    x_map = lambda i: (i, 0)
    w_map = lambda i: (0, 0)                  # constant block index -> weights DMA'd once
    full = lambda shp: pl.BlockSpec(shp, w_map)

    mean, scale = pl.pallas_call(
        rl_model_kernel,
        out_shape=(
            jax.ShapeDtypeStruct((B, MEAN_DIM), jnp.float32),
            jax.ShapeDtypeStruct((B, STD_DIM), jnp.float32),
        ),
        grid_spec=pltpu.PrefetchScalarGridSpec(
            num_scalar_prefetch=0,
            grid=grid,
            in_specs=[
                pl.BlockSpec((tb, IN_DIM), x_map),
                full((IN_DIM, HID)), full((1, HID)),
                full((HID, HID)), full((1, HID)),
                full((HID, HID)), full((1, HID)),
                full((HID, HEAD_DIM)), full((1, HEAD_DIM)),
            ],
            out_specs=[
                pl.BlockSpec((tb, MEAN_DIM), x_map),
                pl.BlockSpec((tb, STD_DIM), x_map),
            ],
        ),
        compiler_params=pltpu.CompilerParams(
            dimension_semantics=("parallel",),
        ),
    )(x, w1, b1, w2, b2, w3, b3, wh, bh)

    return mean, scale


def init_params(key):
    """Deterministic Kaiming-uniform-ish init matching nn.Linear shapes."""
    ks = jax.random.split(key, 10)

    def linear(kw, kb, fan_in, fan_out):
        bound = 1.0 / jnp.sqrt(fan_in)
        w = jax.random.uniform(kw, (fan_in, fan_out), jnp.float32, -bound, bound)
        b = jax.random.uniform(kb, (1, fan_out), jnp.float32, -bound, bound)
        return w, b

    w1, b1 = linear(ks[0], ks[1], IN_DIM, HID)
    w2, b2 = linear(ks[2], ks[3], HID, HID)
    w3, b3 = linear(ks[4], ks[5], HID, HID)
    wm, bm = linear(ks[6], ks[7], HID, MEAN_DIM)
    ws, bs = linear(ks[8], ks[9], HID, STD_DIM)
    return (w1, b1, w2, b2, w3, b3, wm, bm, ws, bs)


def reference_forward(x, params):
    """Pure-f32 reference matching the PyTorch module."""
    (w1, b1, w2, b2, w3, b3, wm, bm, ws, bs) = params
    h = jnp.maximum(x @ w1 + b1, 0.0)
    h = jnp.maximum(h @ w2 + b2, 0.0)
    h = jnp.maximum(h @ w3 + b3, 0.0)
    mean = h @ wm + bm
    scale = jnp.exp(h @ ws + bs)               # (B, 1), broadcastable against mean
    return mean, scale


def reference_forward_bf16(x, params):
    """Reference with the same bf16-in / f32-accum dot discipline as the kernel."""
    (w1, b1, w2, b2, w3, b3, wm, bm, ws, bs) = params
    bf = jnp.bfloat16
    dot = lambda a, w: jnp.dot(a.astype(bf), w.astype(bf),
                               preferred_element_type=jnp.float32)
    h = jnp.maximum(dot(x, w1) + b1, 0.0)
    h = jnp.maximum(dot(h, w2) + b2, 0.0)
    h = jnp.maximum(dot(h, w3) + b3, 0.0)
    mean = dot(h, wm) + bm
    scale = jnp.exp(dot(h, ws) + bs)
    return mean, scale


if __name__ == "__main__":
    key = jax.random.PRNGKey(0)
    kp, kx = jax.random.split(key)

    params = init_params(kp)
    prepared = prepare_params(params)

    # B=8: single full block.  B=37: multi-step grid with a masked boundary
    # block (exercises the non-divisible batch path used instead of padding).
    for B in (8, 37):
        x = jax.random.normal(jax.random.fold_in(kx, B), (B, IN_DIM), jnp.float32)

        mean, scale = rl_model_forward(x, prepared)
        jax.block_until_ready((mean, scale))

        assert mean.shape == (B, MEAN_DIM) and scale.shape == (B, STD_DIM)

        # Tight check vs a reference using the same bf16-input / f32-accum dots.
        ref_mean_bf, ref_scale_bf = reference_forward_bf16(x, params)
        assert jnp.allclose(mean, ref_mean_bf, atol=5e-3, rtol=5e-3)
        assert jnp.allclose(scale, ref_scale_bf, atol=5e-3, rtol=5e-3)

        # Loose check vs the pure-f32 PyTorch-equivalent reference.
        ref_mean, ref_scale = reference_forward(x, params)
        assert jnp.allclose(mean, ref_mean, atol=5e-2, rtol=5e-2)
        assert jnp.allclose(scale, ref_scale, atol=5e-2, rtol=5e-2)

    # TODO(synk): the torch.distributions.Normal object itself has no Pallas
    # equivalent; the kernel returns its (mean, scale) parameters.
    print("KERNEL_OK")
</pallas_src>

<mosaic_0001>
module attributes {stable_mosaic.version = 11 : i64} {
  func.func @rl_model_kernel(%arg0: i32, %arg1: memref<8x376xf32, #tpu.memory_space<vmem>>, %arg2: memref<376x128xbf16, #tpu.memory_space<vmem>>, %arg3: memref<1x128xf32, #tpu.memory_space<vmem>>, %arg4: memref<128x128xbf16, #tpu.memory_space<vmem>>, %arg5: memref<1x128xf32, #tpu.memory_space<vmem>>, %arg6: memref<128x128xbf16, #tpu.memory_space<vmem>>, %arg7: memref<1x128xf32, #tpu.memory_space<vmem>>, %arg8: memref<128x18xbf16, #tpu.memory_space<vmem>>, %arg9: memref<1x18xf32, #tpu.memory_space<vmem>>, %arg10: memref<8x17xf32, #tpu.memory_space<vmem>>, %arg11: memref<8x1xf32, #tpu.memory_space<vmem>>) attributes {dimension_semantics = [#tpu.dimension_semantics<parallel>], iteration_bounds = array<i64: 1>, scalar_prefetch = 0 : i64, scratch_operands = 0 : i64, tpu.core_type = #tpu.core_type<tc>, window_params = [{transform_indices = @transform_0, window_bounds = array<i64: 8, 376>}, {pipeline_mode = #tpu.pipeline_mode<synchronous>, transform_indices = @transform_1, window_bounds = array<i64: 376, 128>}, {pipeline_mode = #tpu.pipeline_mode<synchronous>, transform_indices = @transform_2, window_bounds = array<i64: 1, 128>}, {pipeline_mode = #tpu.pipeline_mode<synchronous>, transform_indices = @transform_3, window_bounds = array<i64: 128, 128>}, {pipeline_mode = #tpu.pipeline_mode<synchronous>, transform_indices = @transform_4, window_bounds = array<i64: 1, 128>}, {pipeline_mode = #tpu.pipeline_mode<synchronous>, transform_indices = @transform_5, window_bounds = array<i64: 128, 128>}, {pipeline_mode = #tpu.pipeline_mode<synchronous>, transform_indices = @transform_6, window_bounds = array<i64: 1, 128>}, {pipeline_mode = #tpu.pipeline_mode<synchronous>, transform_indices = @transform_7, window_bounds = array<i64: 128, 18>}, {pipeline_mode = #tpu.pipeline_mode<synchronous>, transform_indices = @transform_8, window_bounds = array<i64: 1, 18>}, {transform_indices = @transform_9, window_bounds = array<i64: 8, 17>}, {transform_indices = @transform_10, window_bounds = array<i64: 8, 1>}]} {
    %c0 = arith.constant 0 : index
    %c0_0 = arith.constant 0 : index
    %0 = vector.load %arg1[%c0, %c0_0] : memref<8x376xf32, #tpu.memory_space<vmem>>, vector<8x376xf32>
    %1 = arith.truncf %0 : vector<8x376xf32> to vector<8x376xbf16>
    %c0_1 = arith.constant 0 : index
    %c0_2 = arith.constant 0 : index
    %2 = vector.load %arg2[%c0_1, %c0_2] : memref<376x128xbf16, #tpu.memory_space<vmem>>, vector<376x128xbf16>
    %cst = arith.constant dense<0.000000e+00> : vector<8x128xf32>
    %3 = tpu.matmul %1, %2, %cst {dimension_numbers = #tpu.dot_dimension_numbers<[1], [0], [0], [1], [0, 0, 1, 1], [], []>} : vector<8x376xbf16>, vector<376x128xbf16>, vector<8x128xf32> -> vector<8x128xf32>
    %c0_3 = arith.constant 0 : index
    %c0_4 = arith.constant 0 : index
    %4 = vector.load %arg3[%c0_3, %c0_4] : memref<1x128xf32, #tpu.memory_space<vmem>>, vector<1x128xf32>
    %5 = vector.broadcast %4 : vector<1x128xf32> to vector<8x128xf32>
    %6 = arith.addf %3, %5 : vector<8x128xf32>
    %cst_5 = arith.constant 0.000000e+00 : f32
    %7 = vector.broadcast %cst_5 : f32 to vector<8x128xf32>
    %8 = arith.maximumf %6, %7 : vector<8x128xf32>
    %9 = arith.truncf %8 : vector<8x128xf32> to vector<8x128xbf16>
    %c0_6 = arith.constant 0 : index
    %c0_7 = arith.constant 0 : index
    %10 = vector.load %arg4[%c0_6, %c0_7] : memref<128x128xbf16, #tpu.memory_space<vmem>>, vector<128x128xbf16>
    %cst_8 = arith.constant dense<0.000000e+00> : vector<8x128xf32>
    %11 = tpu.matmul %9, %10, %cst_8 {dimension_numbers = #tpu.dot_dimension_numbers<[1], [0], [0], [1], [0, 0, 1, 1], [], []>} : vector<8x128xbf16>, vector<128x128xbf16>, vector<8x128xf32> -> vector<8x128xf32>
    %c0_9 = arith.constant 0 : index
    %c0_10 = arith.constant 0 : index
    %12 = vector.load %arg5[%c0_9, %c0_10] : memref<1x128xf32, #tpu.memory_space<vmem>>, vector<1x128xf32>
    %13 = vector.broadcast %12 : vector<1x128xf32> to vector<8x128xf32>
    %14 = arith.addf %11, %13 : vector<8x128xf32>
    %cst_11 = arith.constant 0.000000e+00 : f32
    %15 = vector.broadcast %cst_11 : f32 to vector<8x128xf32>
    %16 = arith.maximumf %14, %15 : vector<8x128xf32>
    %17 = arith.truncf %16 : vector<8x128xf32> to vector<8x128xbf16>
    %c0_12 = arith.constant 0 : index
    %c0_13 = arith.constant 0 : index
    %18 = vector.load %arg6[%c0_12, %c0_13] : memref<128x128xbf16, #tpu.memory_space<vmem>>, vector<128x128xbf16>
    %cst_14 = arith.constant dense<0.000000e+00> : vector<8x128xf32>
    %19 = tpu.matmul %17, %18, %cst_14 {dimension_numbers = #tpu.dot_dimension_numbers<[1], [0], [0], [1], [0, 0, 1, 1], [], []>} : vector<8x128xbf16>, vector<128x128xbf16>, vector<8x128xf32> -> vector<8x128xf32>
    %c0_15 = arith.constant 0 : index
    %c0_16 = arith.constant 0 : index
    %20 = vector.load %arg7[%c0_15, %c0_16] : memref<1x128xf32, #tpu.memory_space<vmem>>, vector<1x128xf32>
    %21 = vector.broadcast %20 : vector<1x128xf32> to vector<8x128xf32>
    %22 = arith.addf %19, %21 : vector<8x128xf32>
    %cst_17 = arith.constant 0.000000e+00 : f32
    %23 = vector.broadcast %cst_17 : f32 to vector<8x128xf32>
    %24 = arith.maximumf %22, %23 : vector<8x128xf32>
    %25 = arith.truncf %24 : vector<8x128xf32> to vector<8x128xbf16>
    %c0_18 = arith.constant 0 : index
    %c0_19 = arith.constant 0 : index
    %26 = vector.load %arg8[%c0_18, %c0_19] : memref<128x18xbf16, #tpu.memory_space<vmem>>, vector<128x18xbf16>
    %cst_20 = arith.constant dense<0.000000e+00> : vector<8x18xf32>
    %27 = tpu.matmul %25, %26, %cst_20 {dimension_numbers = #tpu.dot_dimension_numbers<[1], [0], [0], [1], [0, 0, 1, 1], [], []>} : vector<8x128xbf16>, vector<128x18xbf16>, vector<8x18xf32> -> vector<8x18xf32>
    %c0_21 = arith.constant 0 : index
    %c0_22 = arith.constant 0 : index
    %28 = vector.load %arg9[%c0_21, %c0_22] : memref<1x18xf32, #tpu.memory_space<vmem>>, vector<1x18xf32>
    %29 = vector.broadcast %28 : vector<1x18xf32> to vector<8x18xf32>
    %30 = arith.addf %27, %29 : vector<8x18xf32>
    %31 = vector.extract_strided_slice %30 {offsets = [0, 0], sizes = [8, 17], strides = [1, 1]} : vector<8x18xf32> to vector<8x17xf32>
    %c0_23 = arith.constant 0 : index
    %c0_24 = arith.constant 0 : index
    %32 = vector.load %arg10[%c0_23, %c0_24] : memref<8x17xf32, #tpu.memory_space<vmem>>, vector<8x17xf32>
    tpu.vector_store %arg10[%c0_23, %c0_24], %31 {strides = array<i32>} : memref<8x17xf32, #tpu.memory_space<vmem>>, vector<8x17xf32>,
    %33 = vector.extract_strided_slice %30 {offsets = [0, 17], sizes = [8, 1], strides = [1, 1]} : vector<8x18xf32> to vector<8x1xf32>
    %34 = math.exp %33 : vector<8x1xf32>
    %c0_25 = arith.constant 0 : index
    %c0_26 = arith.constant 0 : index
    %35 = vector.load %arg11[%c0_25, %c0_26] : memref<8x1xf32, #tpu.memory_space<vmem>>, vector<8x1xf32>
    tpu.vector_store %arg11[%c0_25, %c0_26], %34 {strides = array<i32>} : memref<8x1xf32, #tpu.memory_space<vmem>>, vector<8x1xf32>,
    return
  }
  func.func @transform_0(%arg0: i32) -> (i32, i32) {
    %c0_i32 = arith.constant 0 : i32
    %c0_i32_0 = arith.constant 0 : i32
    return %arg0, %c0_i32 : i32, i32
  }
  func.func @transform_1(%arg0: i32) -> (i32, i32) {
    %c0_i32 = arith.constant 0 : i32
    %c0_i32_0 = arith.constant 0 : i32
    %c0_i32_1 = arith.constant 0 : i32
    return %c0_i32, %c0_i32_0 : i32, i32
  }
  func.func @transform_2(%arg0: i32) -> (i32, i32) {
    %c0_i32 = arith.constant 0 : i32
    %c0_i32_0 = arith.constant 0 : i32
    %c0_i32_1 = arith.constant 0 : i32
    return %c0_i32, %c0_i32_0 : i32, i32
  }
  func.func @transform_3(%arg0: i32) -> (i32, i32) {
    %c0_i32 = arith.constant 0 : i32
    %c0_i32_0 = arith.constant 0 : i32
    %c0_i32_1 = arith.constant 0 : i32
    return %c0_i32, %c0_i32_0 : i32, i32
  }
  func.func @transform_4(%arg0: i32) -> (i32, i32) {
    %c0_i32 = arith.constant 0 : i32
    %c0_i32_0 = arith.constant 0 : i32
    %c0_i32_1 = arith.constant 0 : i32
    return %c0_i32, %c0_i32_0 : i32, i32
  }
  func.func @transform_5(%arg0: i32) -> (i32, i32) {
    %c0_i32 = arith.constant 0 : i32
    %c0_i32_0 = arith.constant 0 : i32
    %c0_i32_1 = arith.constant 0 : i32
    return %c0_i32, %c0_i32_0 : i32, i32
  }
  func.func @transform_6(%arg0: i32) -> (i32, i32) {
    %c0_i32 = arith.constant 0 : i32
    %c0_i32_0 = arith.constant 0 : i32
    %c0_i32_1 = arith.constant 0 : i32
    return %c0_i32, %c0_i32_0 : i32, i32
  }
  func.func @transform_7(%arg0: i32) -> (i32, i32) {
    %c0_i32 = arith.constant 0 : i32
    %c0_i32_0 = arith.constant 0 : i32
    %c0_i32_1 = arith.constant 0 : i32
    return %c0_i32, %c0_i32_0 : i32, i32
  }
  func.func @transform_8(%arg0: i32) -> (i32, i32) {
    %c0_i32 = arith.constant 0 : i32
    %c0_i32_0 = arith.constant 0 : i32
    %c0_i32_1 = arith.constant 0 : i32
    return %c0_i32, %c0_i32_0 : i32, i32
  }
  func.func @transform_9(%arg0: i32) -> (i32, i32) {
    %c0_i32 = arith.constant 0 : i32
    %c0_i32_0 = arith.constant 0 : i32
    return %arg0, %c0_i32 : i32, i32
  }
  func.func @transform_10(%arg0: i32) -> (i32, i32) {
    %c0_i32 = arith.constant 0 : i32
    %c0_i32_0 = arith.constant 0 : i32
    return %arg0, %c0_i32 : i32, i32
  }
}

</mosaic_0001>

<llo_original>
// kernel: rl_model_forward.1
$region0: #{rl_model_forward.1}
  #allocation0 [shape = 'u32[]', space=smem, size = 0x4, offset = 0x4, fixed_abs, tag = 'smem constant byte address 0x4 - core index']
  #allocation1 [shape = 'u32[72,128]{1,0:T(1,128)}', space=vmem, size = 0x9000, scoped, tag = 'internal scratch']
  %s0 = inlined_call_operand.hbm [shape: f32[8,376], index: 0, kind: input, shape index: {}]
  %s1 = inlined_call_operand.hbm [shape: bf16[376,128], index: 1, kind: input, shape index: {}]
  %s2 = inlined_call_operand.vmem [shape: f32[1,128], index: 2, kind: input, shape index: {}]
  %s3 = inlined_call_operand.vmem [shape: bf16[128,128], index: 3, kind: input, shape index: {}]
  %s4 = inlined_call_operand.vmem [shape: f32[1,128], index: 4, kind: input, shape index: {}]
  %s5 = inlined_call_operand.hbm [shape: bf16[128,128], index: 5, kind: input, shape index: {}]
  %s6 = inlined_call_operand.vmem [shape: f32[1,128], index: 6, kind: input, shape index: {}]
  %s7 = inlined_call_operand.vmem [shape: bf16[128,18], index: 7, kind: input, shape index: {}]
  %s8 = inlined_call_operand.vmem [shape: f32[1,18], index: 8, kind: input, shape index: {}]
  %s9 = inlined_call_operand.hbm [shape: f32[8,17], index: 9, kind: output, shape index: {0}]
  %s10 = inlined_call_operand.vmem [shape: f32[8,1], index: 10, kind: output, shape index: {1}]
  %11 = xla_tuple %s9, %s10
  %s12 = sld [smem:[#allocation0]]
  $region66: #{rl_model_forward.1} parent=0
    _
  %s14 = ssub.s32 1, %s12
  %s15 = scalar_select 0, %s14, %s12
  $region1: #{rl_model_forward.1} parent=0
    #allocation2 [shape = 'u8[12288]{0}', space=vmem, size = 0x3000, scoped, tag = 'input window, operand 0, single buffered']
    #allocation3 [shape = 's32[1]{0}', space=sflag, size = 0x4, scoped, tag = 'scoped memory for rl_model_forward.1']
    #allocation4 [shape = 's32[1]{0}', space=sflag, size = 0x4, scoped, tag = 'scoped memory for rl_model_forward.1']
    #allocation5 [shape = 'u8[96256]{0}', space=vmem, size = 0x17800, scoped, tag = 'input window, operand 1, single buffered']
    #allocation6 [shape = 's32[1]{0}', space=sflag, size = 0x4, scoped, tag = 'scoped memory for rl_model_forward.1']
    #allocation7 [shape = 'u8[32768]{0}', space=vmem, size = 0x8000, scoped, tag = 'input window, operand 5, single buffered']
    #allocation8 [shape = 'u8[4096]{0}', space=vmem, size = 0x1000, scoped, tag = 'output window, operand 0, single buffered']
    %16 = vsyncpa [#allocation3], 0
    %17 = vsyncpa [#allocation6], 0
    %18 = vsyncpa [#allocation4], 0
    // Predicated region
    $region2: #{rl_model_forward.1} parent=1 // pred_check
      _
    $region3: #{rl_model_forward.1} parent=1 // pred_check_branch
      %20 = sbr.rel (0) target = $region5
    $region4: #{rl_model_forward.1} parent=1 // pred_region
      %22 = vsyncadd [#allocation3], 0
      %s24 = sshll.u32 %s0, 4
      %s25 = int_to_ptr.hbm [resolvable:$true] %s24
      %s26 = sshll.u32 [#allocation2], 4
      %s27 = int_to_ptr.vmem [resolvable:$true] %s26
      %29 = dma.hbm_to_vmem [thread:$0]  %s25, 384, %s27, [#allocation3]
    $region5: #{rl_model_forward.1} parent=1 // pred_fallthru
      _
    // Predicated region
    $region6: #{rl_model_forward.1} parent=1 // pred_check
      _
    $region7: #{rl_model_forward.1} parent=1 // pred_check_branch
      %31 = sbr.rel (0) target = $region9
    $region8: #{rl_model_forward.1} parent=1 // pred_region
      %33 = vsyncadd [#allocation6], 0
      %s34 = sshll.u32 %s1, 4
      %s35 = int_to_ptr.hbm [resolvable:$true] %s34
      %s36 = sshll.u32 [#allocation5], 4
      %s37 = int_to_ptr.vmem [resolvable:$true] %s36
      %42 = dma.hbm_to_vmem [thread:$0]  %s35, 3008, %s37, [#allocation6], 64, 64, 4
    $region9: #{rl_model_forward.1} parent=1 // pred_fallthru
      _
    // Predicated region
    $region10: #{rl_model_forward.1} parent=1 // pred_check
      _
    $region11: #{rl_model_forward.1} parent=1 // pred_check_branch
      %44 = sbr.rel (0) target = $region13
    $region12: #{rl_model_forward.1} parent=1 // pred_region
      _
    $region13: #{rl_model_forward.1} parent=1 // pred_fallthru
      _
    // Predicated region
    $region14: #{rl_model_forward.1} parent=1 // pred_check
      _
    $region15: #{rl_model_forward.1} parent=1 // pred_check_branch
      %46 = sbr.rel (0) target = $region17
    $region16: #{rl_model_forward.1} parent=1 // pred_region
      _
    $region17: #{rl_model_forward.1} parent=1 // pred_fallthru
      _
    // Predicated region
    $region18: #{rl_model_forward.1} parent=1 // pred_check
      _
    $region19: #{rl_model_forward.1} parent=1 // pred_check_branch
      %48 = sbr.rel (0) target = $region21
    $region20: #{rl_model_forward.1} parent=1 // pred_region
      _
    $region21: #{rl_model_forward.1} parent=1 // pred_fallthru
      _
    // Predicated region
    $region22: #{rl_model_forward.1} parent=1 // pred_check
      _
    $region23: #{rl_model_forward.1} parent=1 // pred_check_branch
      %50 = sbr.rel (0) target = $region25
    $region24: #{rl_model_forward.1} parent=1 // pred_region
      %52 = vsyncadd [#allocation6], 0
      %s53 = sshll.u32 %s5, 4
      %s54 = int_to_ptr.hbm [resolvable:$true] %s53
      %s55 = sshll.u32 [#allocation7], 4
      %s56 = int_to_ptr.vmem [resolvable:$true] %s55
      %61 = dma.hbm_to_vmem [thread:$0]  %s54, 1024, %s56, [#allocation6], 64, 64, 4
    $region25: #{rl_model_forward.1} parent=1 // pred_fallthru
      _
    // Predicated region
    $region26: #{rl_model_forward.1} parent=1 // pred_check
      _
    $region27: #{rl_model_forward.1} parent=1 // pred_check_branch
      %63 = sbr.rel (0) target = $region29
    $region28: #{rl_model_forward.1} parent=1 // pred_region
      _
    $region29: #{rl_model_forward.1} parent=1 // pred_fallthru
      _
    // Predicated region
    $region30: #{rl_model_forward.1} parent=1 // pred_check
      _
    $region31: #{rl_model_forward.1} parent=1 // pred_check_branch
      %65 = sbr.rel (0) target = $region33
    $region32: #{rl_model_forward.1} parent=1 // pred_region
      _
    $region33: #{rl_model_forward.1} parent=1 // pred_fallthru
      _
    // Predicated region
    $region34: #{rl_model_forward.1} parent=1 // pred_check
      _
    $region35: #{rl_model_forward.1} parent=1 // pred_check_branch
      %67 = sbr.rel (0) target = $region37
    $region36: #{rl_model_forward.1} parent=1 // pred_region
      _
    $region37: #{rl_model_forward.1} parent=1 // pred_fallthru
      _
    // Predicated region
    $region38: #{rl_model_forward.1} parent=1 // pred_check
      _
    $region39: #{rl_model_forward.1} parent=1 // pred_check_branch
      %69 = sbr.rel (0) target = $region41
    $region40: #{rl_model_forward.1} parent=1 // pred_region
      %71 = dma.done [#allocation3], 384
    $region41: #{rl_model_forward.1} parent=1 // pred_fallthru
      _
    // Predicated region
    $region42: #{rl_model_forward.1} parent=1 // pred_check
      _
    $region43: #{rl_model_forward.1} parent=1 // pred_check_branch
      %73 = sbr.rel (0) target = $region45
    $region44: #{rl_model_forward.1} parent=1 // pred_region
      %75 = dma.done [#allocation6], 3008
    $region45: #{rl_model_forward.1} parent=1 // pred_fallthru
      _
    // Predicated region
    $region46: #{rl_model_forward.1} parent=1 // pred_check
      _
    $region47: #{rl_model_forward.1} parent=1 // pred_check_branch
      %77 = sbr.rel (0) target = $region49
    $region48: #{rl_model_forward.1} parent=1 // pred_region
      %79 = dma.done [#allocation6], 1024
    $region49: #{rl_model_forward.1} parent=1 // pred_fallthru
      _
    %v80 = vld [vmem:[#allocation2] sm:$0xff]
    %v81 = vld [vmem:[#allocation2 + $0x8] sm:$0xff]
    %v82 = vld [vmem:[#allocation2 + $0x10] sm:$0xff]
    %v83 = vpack.c.bf16 %v80, %v80
    %v84 = vpack.c.bf16 %v81, %v81
    %v85 = vpack.c.bf16 %v82, %v82
    %v86 = vld [vmem:[#allocation5] sm:$0xf]
    %v87 = vld [vmem:[#allocation5 + $0x4] sm:$0xf]
    %v88 = vld [vmem:[#allocation5 + $0x8] sm:$0xf]
    %v89 = vld [vmem:[#allocation5 + $0xc] sm:$0xf]
    %v90 = vld [vmem:[#allocation5 + $0x10] sm:$0xf]
    %v91 = vld [vmem:[#allocation5 + $0x14] sm:$0xf]
    %v92 = vld [vmem:[#allocation5 + $0x18] sm:$0xf]
    %v93 = vld [vmem:[#allocation5 + $0x1c] sm:$0xf]
    %v94 = vld [vmem:[#allocation5 + $0x20] sm:$0xf]
    %v95 = vld [vmem:[#allocation5 + $0x24] sm:$0xf]
    %v96 = vld [vmem:[#allocation5 + $0x28] sm:$0xf]
    %v97 = vld [vmem:[#allocation5 + $0x2c] sm:$0xf]
    %v98 = vld [vmem:[#allocation5 + $0x30] sm:$0xf]
    %v99 = vld [vmem:[#allocation5 + $0x34] sm:$0xf]
    %v100 = vld [vmem:[#allocation5 + $0x38] sm:$0xf]
    %v101 = vld [vmem:[#allocation5 + $0x3c] sm:$0xf]
    %v102 = vld [vmem:[#allocation5 + $0x40] sm:$0xf]
    %v103 = vld [vmem:[#allocation5 + $0x44] sm:$0xf]
    %v104 = vld [vmem:[#allocation5 + $0x48] sm:$0xf]
    %v105 = vld [vmem:[#allocation5 + $0x4c] sm:$0xf]
    %v106 = vld [vmem:[#allocation5 + $0x50] sm:$0xf]
    %v107 = vld [vmem:[#allocation5 + $0x54] sm:$0xf]
    %v108 = vld [vmem:[#allocation5 + $0x58] sm:$0xf]
    %v109 = vld [vmem:[#allocation5 + $0x5c] sm:$0xf]
    %v110 = vld [vmem:[#allocation5 + $0x60] sm:$0xf]
    %v111 = vld [vmem:[#allocation5 + $0x64] sm:$0xf]
    %v112 = vld [vmem:[#allocation5 + $0x68] sm:$0xf]
    %v113 = vld [vmem:[#allocation5 + $0x6c] sm:$0xf]
    %v114 = vld [vmem:[#allocation5 + $0x70] sm:$0xf]
    %v115 = vld [vmem:[#allocation5 + $0x74] sm:$0xf]
    %v116 = vld [vmem:[#allocation5 + $0x78] sm:$0xf]
    %v117 = vld [vmem:[#allocation5 + $0x7c] sm:$0xf]
    %v118 = vld [vmem:[#allocation5 + $0x80] sm:$0xf]
    %v119 = vld [vmem:[#allocation5 + $0x84] sm:$0xf]
    %v120 = vld [vmem:[#allocation5 + $0x88] sm:$0xf]
    %v121 = vld [vmem:[#allocation5 + $0x8c] sm:$0xf]
    %v122 = vld [vmem:[#allocation5 + $0x90] sm:$0xf]
    %v123 = vld [vmem:[#allocation5 + $0x94] sm:$0xf]
    %v124 = vld [vmem:[#allocation5 + $0x98] sm:$0xf]
    %v125 = vld [vmem:[#allocation5 + $0x9c] sm:$0xf]
    %v126 = vld [vmem:[#allocation5 + $0xa0] sm:$0xf]
    %v127 = vld [vmem:[#allocation5 + $0xa4] sm:$0xf]
    %v128 = vld [vmem:[#allocation5 + $0xa8] sm:$0xf]
    %v129 = vld [vmem:[#allocation5 + $0xac] sm:$0xf]
    %v130 = vld [vmem:[#allocation5 + $0xb0] sm:$0xf]
    %v131 = vld [vmem:[#allocation5 + $0xb4] sm:$0xf]
    %v132 = vld [vmem:[#allocation5 + $0xb8] sm:$0xf]
    %v133 = vld [vmem:[%s2] sm:$0x1]
    %v135 = vperm.slane %v133, 0
    %v184 = vunpack.c.l.b16 %v86
    %v185 = vunpack.c.l.b16 %v87
    %v186 = vunpack.c.l.b16 %v88
    %v187 = vunpack.c.l.b16 %v89
    %v188 = vunpack.c.l.b16 %v90
    %v189 = vunpack.c.l.b16 %v91
    %v190 = vunpack.c.l.b16 %v92
    %v191 = vunpack.c.l.b16 %v93
    %v192 = vunpack.c.l.b16 %v94
    %v193 = vunpack.c.l.b16 %v95
    %v194 = vunpack.c.l.b16 %v96
    %v195 = vunpack.c.l.b16 %v97
    %v196 = vunpack.c.l.b16 %v98
    %v197 = vunpack.c.l.b16 %v99
    %v198 = vunpack.c.l.b16 %v100
    %v199 = vunpack.c.l.b16 %v101
    %v200 = vunpack.c.l.b16 %v102
    %v201 = vunpack.c.l.b16 %v103
    %v202 = vunpack.c.l.b16 %v104
    %v203 = vunpack.c.l.b16 %v105
    %v204 = vunpack.c.l.b16 %v106
    %v205 = vunpack.c.l.b16 %v107
    %v206 = vunpack.c.l.b16 %v108
    %v207 = vunpack.c.l.b16 %v109
    %v208 = vunpack.c.l.b16 %v110
    %v209 = vunpack.c.l.b16 %v111
    %v210 = vunpack.c.l.b16 %v112
    %v211 = vunpack.c.l.b16 %v113
    %v212 = vunpack.c.l.b16 %v114
    %v213 = vunpack.c.l.b16 %v115
    %v214 = vunpack.c.l.b16 %v116
    %v215 = vunpack.c.l.b16 %v117
    %v216 = vunpack.c.l.b16 %v118
    %v217 = vunpack.c.l.b16 %v119
    %v218 = vunpack.c.l.b16 %v120
    %v219 = vunpack.c.l.b16 %v121
    %v220 = vunpack.c.l.b16 %v122
    %v221 = vunpack.c.l.b16 %v123
    %v222 = vunpack.c.l.b16 %v124
    %v223 = vunpack.c.l.b16 %v125
    %v224 = vunpack.c.l.b16 %v126
    %v225 = vunpack.c.l.b16 %v127
    %v226 = vunpack.c.l.b16 %v128
    %v227 = vunpack.c.l.b16 %v129
    %v228 = vunpack.c.l.b16 %v130
    %v229 = vunpack.c.l.b16 %v131
    %v230 = vunpack.c.l.b16 %v132
    %v231 = vpack.c.b16 %v185, %v184
    %v232 = vpack.c.b16 %v187, %v186
    %v233 = vpack.c.b16 %v189, %v188
    %v234 = vpack.c.b16 %v191, %v190
    %v235 = vpack.c.b16 %v193, %v192
    %v236 = vpack.c.b16 %v195, %v194
    %v237 = vpack.c.b16 %v197, %v196
    %v238 = vpack.c.b16 %v199, %v198
    %v239 = vpack.c.b16 %v201, %v200
    %v240 = vpack.c.b16 %v203, %v202
    %v241 = vpack.c.b16 %v205, %v204
    %v242 = vpack.c.b16 %v207, %v206
    %v243 = vpack.c.b16 %v209, %v208
    %v244 = vpack.c.b16 %v211, %v210
    %v245 = vpack.c.b16 %v213, %v212
    %v246 = vpack.c.b16 %v215, %v214
    %v247 = vpack.c.b16 %v217, %v216
    %v248 = vpack.c.b16 %v219, %v218
    %v249 = vpack.c.b16 %v221, %v220
    %v250 = vpack.c.b16 %v223, %v222
    %v251 = vpack.c.b16 %v225, %v224
    %v252 = vpack.c.b16 %v227, %v226
    %v253 = vpack.c.b16 %v229, %v228
    %v254 = vpack.c.b16 %v230, %v230
    %vm278 = vcmask 982016
    %v280 = vsel %vm278, %v85, 0
    %vm282 = vcmask 1043456
    %v284 = vsel %vm282, %v254, 0
    %286 = vmatpush.bf16.msra.mxu0 %v238
    %287 = vmatpush.bf16.msra.mxu0 %v237
    %288 = vmatpush.bf16.msra.mxu0 %v236
    %289 = vmatpush.bf16.msra.mxu0 %v235
    %290 = vmatpush.bf16.msra.mxu0 %v234
    %291 = vmatpush.bf16.msra.mxu0 %v233
    %292 = vmatpush.bf16.msra.mxu0 %v232
    %293 = vmatpush.bf16.msra.mxu0 %v231
    %294 = vmatmul.bf16.gmra.mxu0 %v83
    %v295 = vpop.f32.mrf.mxu0
    %v296 = vadd.f32 %v135, %v295
    %v297 = vpop.f32.mrf.mxu0
    %298 = vdwg.mxu0
    %299 = vmatpush.bf16.msra.mxu0 %v246
    %300 = vmatpush.bf16.msra.mxu0 %v245
    %301 = vmatpush.bf16.msra.mxu0 %v244
    %302 = vmatpush.bf16.msra.mxu0 %v243
    %303 = vmatpush.bf16.msra.mxu0 %v242
    %304 = vmatpush.bf16.msra.mxu0 %v241
    %305 = vmatpush.bf16.msra.mxu0 %v240
    %306 = vmatpush.bf16.msra.mxu0 %v239
    %307 = vmatmul.bf16.gmra.mxu0 %v84
    %v308 = vpop.f32.mrf.mxu0
    %v309 = vadd.f32 %v296, %v308
    %v310 = vpop.f32.mrf.mxu0
    %311 = vdwg.mxu0
    %312 = vmatpush.bf16.msra.mxu0 %v284
    %313 = vmatpush.bf16.msra.mxu0 %v253
    %314 = vmatpush.bf16.msra.mxu0 %v252
    %315 = vmatpush.bf16.msra.mxu0 %v251
    %316 = vmatpush.bf16.msra.mxu0 %v250
    %317 = vmatpush.bf16.msra.mxu0 %v249
    %318 = vmatpush.bf16.msra.mxu0 %v248
    %319 = vmatpush.bf16.msra.mxu0 %v247
    %320 = vmatmul.bf16.gmra.mxu0 %v280
    %v321 = vpop.f32.mrf.mxu0
    %v322 = vadd.f32 %v309, %v321
    %v323 = vpop.f32.mrf.mxu0
    %324 = vdwg.mxu0
    %v325 = vmax.f32 %v322, 0.0
    %v326 = vpack.c.bf16 %v325, %v325
    %v327 = vld [vmem:[%s3] sm:$0xf]
    %v328 = vld [vmem:[%s3 + $0x4] sm:$0xf]
    %v329 = vld [vmem:[%s3 + $0x8] sm:$0xf]
    %v330 = vld [vmem:[%s3 + $0xc] sm:$0xf]
    %v331 = vld [vmem:[%s3 + $0x10] sm:$0xf]
    %v332 = vld [vmem:[%s3 + $0x14] sm:$0xf]
    %v333 = vld [vmem:[%s3 + $0x18] sm:$0xf]
    %v334 = vld [vmem:[%s3 + $0x1c] sm:$0xf]
    %v335 = vld [vmem:[%s3 + $0x20] sm:$0xf]
    %v336 = vld [vmem:[%s3 + $0x24] sm:$0xf]
    %v337 = vld [vmem:[%s3 + $0x28] sm:$0xf]
    %v338 = vld [vmem:[%s3 + $0x2c] sm:$0xf]
    %v339 = vld [vmem:[%s3 + $0x30] sm:$0xf]
    %v340 = vld [vmem:[%s3 + $0x34] sm:$0xf]
    %v341 = vld [vmem:[%s3 + $0x38] sm:$0xf]
    %v342 = vld [vmem:[%s3 + $0x3c] sm:$0xf]
    %v343 = vld [vmem:[%s4] sm:$0x1]
    %v345 = vperm.slane %v343, 0
    %v363 = vunpack.c.l.b16 %v327
    %v364 = vunpack.c.l.b16 %v328
    %v365 = vunpack.c.l.b16 %v329
    %v366 = vunpack.c.l.b16 %v330
    %v367 = vunpack.c.l.b16 %v331
    %v368 = vunpack.c.l.b16 %v332
    %v369 = vunpack.c.l.b16 %v333
    %v370 = vunpack.c.l.b16 %v334
    %v371 = vunpack.c.l.b16 %v335
    %v372 = vunpack.c.l.b16 %v336
    %v373 = vunpack.c.l.b16 %v337
    %v374 = vunpack.c.l.b16 %v338
    %v375 = vunpack.c.l.b16 %v339
    %v376 = vunpack.c.l.b16 %v340
    %v377 = vunpack.c.l.b16 %v341
    %v378 = vunpack.c.l.b16 %v342
    %v379 = vpack.c.b16 %v364, %v363
    %v380 = vpack.c.b16 %v366, %v365
    %v381 = vpack.c.b16 %v368, %v367
    %v382 = vpack.c.b16 %v370, %v369
    %v383 = vpack.c.b16 %v372, %v371
    %v384 = vpack.c.b16 %v374, %v373
    %v385 = vpack.c.b16 %v376, %v375
    %v386 = vpack.c.b16 %v378, %v377
    %395 = vmatpush.bf16.msra.mxu0 %v386
    %396 = vmatpush.bf16.msra.mxu0 %v385
    %397 = vmatpush.bf16.msra.mxu0 %v384
    %398 = vmatpush.bf16.msra.mxu0 %v383
    %399 = vmatpush.bf16.msra.mxu0 %v382
    %400 = vmatpush.bf16.msra.mxu0 %v381
    %401 = vmatpush.bf16.msra.mxu0 %v380
    %402 = vmatpush.bf16.msra.mxu0 %v379
    %403 = vmatmul.bf16.gmra.mxu0 %v326
    %v404 = vpop.f32.mrf.mxu0
    %v405 = vadd.f32 %v345, %v404
    %v406 = vpop.f32.mrf.mxu0
    %407 = vdwg.mxu0
    %v408 = vmax.f32 %v405, 0.0
    %v409 = vpack.c.bf16 %v408, %v408
    %v410 = vld [vmem:[#allocation7] sm:$0xf]
    %v411 = vld [vmem:[#allocation7 + $0x4] sm:$0xf]
    %v412 = vld [vmem:[#allocation7 + $0x8] sm:$0xf]
    %v413 = vld [vmem:[#allocation7 + $0xc] sm:$0xf]
    %v414 = vld [vmem:[#allocation7 + $0x10] sm:$0xf]
    %v415 = vld [vmem:[#allocation7 + $0x14] sm:$0xf]
    %v416 = vld [vmem:[#allocation7 + $0x18] sm:$0xf]
    %v417 = vld [vmem:[#allocation7 + $0x1c] sm:$0xf]
    %v418 = vld [vmem:[#allocation7 + $0x20] sm:$0xf]
    %v419 = vld [vmem:[#allocation7 + $0x24] sm:$0xf]
    %v420 = vld [vmem:[#allocation7 + $0x28] sm:$0xf]
    %v421 = vld [vmem:[#allocation7 + $0x2c] sm:$0xf]
    %v422 = vld [vmem:[#allocation7 + $0x30] sm:$0xf]
    %v423 = vld [vmem:[#allocation7 + $0x34] sm:$0xf]
    %v424 = vld [vmem:[#allocation7 + $0x38] sm:$0xf]
    %v425 = vld [vmem:[#allocation7 + $0x3c] sm:$0xf]
    %v426 = vld [vmem:[%s6] sm:$0x1]
    %v428 = vperm.slane %v426, 0
    %v446 = vunpack.c.l.b16 %v410
    %v447 = vunpack.c.l.b16 %v411
    %v448 = vunpack.c.l.b16 %v412
    %v449 = vunpack.c.l.b16 %v413
    %v450 = vunpack.c.l.b16 %v414
    %v451 = vunpack.c.l.b16 %v415
    %v452 = vunpack.c.l.b16 %v416
    %v453 = vunpack.c.l.b16 %v417
    %v454 = vunpack.c.l.b16 %v418
    %v455 = vunpack.c.l.b16 %v419
    %v456 = vunpack.c.l.b16 %v420
    %v457 = vunpack.c.l.b16 %v421
    %v458 = vunpack.c.l.b16 %v422
    %v459 = vunpack.c.l.b16 %v423
    %v460 = vunpack.c.l.b16 %v424
    %v461 = vunpack.c.l.b16 %v425
    %v462 = vpack.c.b16 %v447, %v446
    %v463 = vpack.c.b16 %v449, %v448
    %v464 = vpack.c.b16 %v451, %v450
    %v465 = vpack.c.b16 %v453, %v452
    %v466 = vpack.c.b16 %v455, %v454
    %v467 = vpack.c.b16 %v457, %v456
    %v468 = vpack.c.b16 %v459, %v458
    %v469 = vpack.c.b16 %v461, %v460
    %478 = vmatpush.bf16.msra.mxu0 %v469
    %479 = vmatpush.bf16.msra.mxu0 %v468
    %480 = vmatpush.bf16.msra.mxu0 %v467
    %481 = vmatpush.bf16.msra.mxu0 %v466
    %482 = vmatpush.bf16.msra.mxu0 %v465
    %483 = vmatpush.bf16.msra.mxu0 %v464
    %484 = vmatpush.bf16.msra.mxu0 %v463
    %485 = vmatpush.bf16.msra.mxu0 %v462
    %486 = vmatmul.bf16.gmra.mxu0 %v409
    %v487 = vpop.f32.mrf.mxu0
    %v488 = vadd.f32 %v428, %v487
    %v489 = vpop.f32.mrf.mxu0
    %490 = vdwg.mxu0
    %v491 = vmax.f32 %v488, 0.0
    %v492 = vpack.c.bf16 %v491, %v491
    %v493 = vld [vmem:[%s7] sm:$0xf]
    %v494 = vld [vmem:[%s7 + $0x4] sm:$0xf]
    %v495 = vld [vmem:[%s7 + $0x8] sm:$0xf]
    %v496 = vld [vmem:[%s7 + $0xc] sm:$0xf]
    %v497 = vld [vmem:[%s7 + $0x10] sm:$0xf]
    %v498 = vld [vmem:[%s7 + $0x14] sm:$0xf]
    %v499 = vld [vmem:[%s7 + $0x18] sm:$0xf]
    %v500 = vld [vmem:[%s7 + $0x1c] sm:$0xf]
    %v501 = vld [vmem:[%s7 + $0x20] sm:$0xf]
    %v502 = vld [vmem:[%s7 + $0x24] sm:$0xf]
    %v503 = vld [vmem:[%s7 + $0x28] sm:$0xf]
    %v504 = vld [vmem:[%s7 + $0x2c] sm:$0xf]
    %v505 = vld [vmem:[%s7 + $0x30] sm:$0xf]
    %v506 = vld [vmem:[%s7 + $0x34] sm:$0xf]
    %v507 = vld [vmem:[%s7 + $0x38] sm:$0xf]
    %v508 = vld [vmem:[%s7 + $0x3c] sm:$0xf]
    %v509 = vld [vmem:[%s8] sm:$0x1]
    %v511 = vperm.slane %v509, 0
    %v529 = vunpack.c.l.b16 %v493
    %v530 = vunpack.c.l.b16 %v494
    %v531 = vunpack.c.l.b16 %v495
    %v532 = vunpack.c.l.b16 %v496
    %v533 = vunpack.c.l.b16 %v497
    %v534 = vunpack.c.l.b16 %v498
    %v535 = vunpack.c.l.b16 %v499
    %v536 = vunpack.c.l.b16 %v500
    %v537 = vunpack.c.l.b16 %v501
    %v538 = vunpack.c.l.b16 %v502
    %v539 = vunpack.c.l.b16 %v503
    %v540 = vunpack.c.l.b16 %v504
    %v541 = vunpack.c.l.b16 %v505
    %v542 = vunpack.c.l.b16 %v506
    %v543 = vunpack.c.l.b16 %v507
    %v544 = vunpack.c.l.b16 %v508
    %v545 = vpack.c.b16 %v530, %v529
    %v546 = vpack.c.b16 %v532, %v531
    %v547 = vpack.c.b16 %v534, %v533
    %v548 = vpack.c.b16 %v536, %v535
    %v549 = vpack.c.b16 %v538, %v537
    %v550 = vpack.c.b16 %v540, %v539
    %v551 = vpack.c.b16 %v542, %v541
    %v552 = vpack.c.b16 %v544, %v543
    %561 = vmatpush.bf16.msra.mxu0 %v552
    %562 = vmatpush.bf16.msra.mxu0 %v551
    %563 = vmatpush.bf16.msra.mxu0 %v550
    %564 = vmatpush.bf16.msra.mxu0 %v549
    %565 = vmatpush.bf16.msra.mxu0 %v548
    %566 = vmatpush.bf16.msra.mxu0 %v547
    %567 = vmatpush.bf16.msra.mxu0 %v546
    %568 = vmatpush.bf16.msra.mxu0 %v545
    %569 = vmatmul.bf16.gmra.mxu0 %v492
    %v570 = vpop.f32.mrf.mxu0
    %v571 = vadd.f32 %v511, %v570
    %v572 = vpop.f32.mrf.mxu0
    %573 = vdwg.mxu0
    %vm574 = vcmask 138240
    %575 = vst.msk [vmem:[#allocation8] sm:$0xff] %vm574, %v571
    %v576 = vmul.f32 %v571, 1.442695
    %v577 = vpow.pop %v576
    %579 = vrot.lane.b32.xlu0 %v577, 111
    %v580 = vpop.permute.xlu0 %579
    %vm582 = vcmask 7168
    %583 = vst.msk [vmem:[%s10] sm:$0xff] %vm582, %v580
    // Predicated region
    $region50: #{rl_model_forward.1} parent=1 // pred_check
      _
    $region51: #{rl_model_forward.1} parent=1 // pred_check_branch
      %585 = sbr.rel (0) target = $region53
    $region52: #{rl_model_forward.1} parent=1 // pred_region
      %587 = vsyncadd [#allocation4], 0
      %s589 = sshll.u32 [#allocation8], 4
      %s590 = int_to_ptr.vmem [resolvable:$true] %s589
      %s591 = sshll.u32 %s9, 4
      %s592 = int_to_ptr.hbm [resolvable:$true] %s591
      %594 = dma.vmem_to_hbm [thread:$0]  %s590, 128, %s592, [#allocation4]
    $region53: #{rl_model_forward.1} parent=1 // pred_fallthru
      _
    // Predicated region
    $region54: #{rl_model_forward.1} parent=1 // pred_check
      _
    $region55: #{rl_model_forward.1} parent=1 // pred_check_branch
      %596 = sbr.rel (0) target = $region57
    $region56: #{rl_model_forward.1} parent=1 // pred_region
      _
    $region57: #{rl_model_forward.1} parent=1 // pred_fallthru
      _
    // Predicated region
    $region58: #{rl_model_forward.1} parent=1 // pred_check
      _
    $region59: #{rl_model_forward.1} parent=1 // pred_check_branch
      %598 = sbr.rel (0) target = $region61
    $region60: #{rl_model_forward.1} parent=1 // pred_region
      %600 = dma.done [#allocation4], 128
    $region61: #{rl_model_forward.1} parent=1 // pred_fallthru
      _
    // Predicated region
    $region62: #{rl_model_forward.1} parent=1 // pred_check
      _
    $region63: #{rl_model_forward.1} parent=1 // pred_check_branch
      %602 = sbr.rel (0) target = $region65
    $region64: #{rl_model_forward.1} parent=1 // pred_region
      _
    $region65: #{rl_model_forward.1} parent=1 // pred_fallthru
      _
    %603 = vsyncpa [#allocation3], 1
    %604 = vsyncpa [#allocation6], 1
    %605 = vsyncpa [#allocation4], 1

</llo_original>
